<compile_context>
chip_gen: v5e
topology: v5e:2x2
jax: 0.10.0
libtpu: 0.0.40
codegen_flags: <defaults>
</compile_context>

<pallas_src>
import functools
import math

import jax
import jax.numpy as jnp
from jax.experimental import pallas as pl
from jax.experimental.pallas import tpu as pltpu

_VMEM = pl.BlockSpec(memory_space=pltpu.MemorySpace.VMEM)
_SMEM = pl.BlockSpec(memory_space=pltpu.MemorySpace.SMEM)


# --------------------------------------------------------------------------
# small padding helpers (lane-major layouts for the scalar-stat kernel)
# --------------------------------------------------------------------------
def _pad_last(x, mult):
    n = x.shape[-1]
    pad = (-n) % mult
    if pad:
        pads = [(0, 0)] * (x.ndim - 1) + [(0, pad)]
        x = jnp.pad(x, pads)
    return x


def _to_lane_rows(x):
    """1-D vector -> (rows, 128) with zero padding (long axis on lanes)."""
    return _pad_last(x.reshape(1, -1), 128).reshape(-1, 128)


# --------------------------------------------------------------------------
# fused segmentation kernel: mask-BCE + binary acc + dice, one pass
# --------------------------------------------------------------------------
def _seg_kernel(pred_ref, pmask_ref, true_ref, tmask_ref, out_ref, *, em):
    # pred_ref/pmask_ref/true_ref/tmask_ref: (Em, tile)  (pre-gathered rows)
    # out_ref: (8, tile) per-(batch, split) lane-wide partials, resident across t
    t = pl.program_id(2)

    @pl.when(t == 0)
    def _():
        out_ref[...] = jnp.zeros_like(out_ref)

    f32 = jnp.float32
    tile = out_ref.shape[-1]
    neg = jnp.full((1, tile), -1e30, f32)

    # static <=8-row sub-blocks of the electron axis (bounded unroll & vregs)
    bounds = [(s, min(8, em - s)) for s in range(0, em, 8)]

    # pass 1: running max of *stored* predicted logits over electrons (softmax)
    m = neg
    for s, n in bounds:
        x = pred_ref[pl.ds(s, n), :]
        pm = pmask_ref[pl.ds(s, n), :].astype(f32)
        m = jnp.maximum(
            m, jnp.max(jnp.where(pm > 0.0, x, -1e30), axis=0, keepdims=True))

    zero = jnp.zeros((1, tile), f32)
    bce_a = zero   # sum over union of BCE-with-logits
    cor_a = zero   # sum over union of (pred>0) == true
    uni_a = zero   # union count
    den = zero     # softmax denominator (sum of exp over stored pred)
    s_num = zero   # sum of exp * true   (dice numerator, pre-normalization)
    y_a = zero     # sum of true values  (dice denominator, true part)
    for s, n in bounds:
        x_raw = pred_ref[pl.ds(s, n), :]
        pm = pmask_ref[pl.ds(s, n), :].astype(f32)
        tm = tmask_ref[pl.ds(s, n), :].astype(f32)
        x = x_raw * pm                       # union fill-with-zero semantics
        y = true_ref[pl.ds(s, n), :] * tm
        u = jnp.maximum(pm, tm)              # union of stored indices

        bce = jnp.maximum(x, 0.0) - x * y + jnp.log1p(jnp.exp(-jnp.abs(x)))
        pb = jnp.where(x > 0.0, 1.0, 0.0)
        correct = jnp.where(pb == y, 1.0, 0.0)
        bce_a = bce_a + jnp.sum(u * bce, axis=0, keepdims=True)
        cor_a = cor_a + jnp.sum(u * correct, axis=0, keepdims=True)
        uni_a = uni_a + jnp.sum(u, axis=0, keepdims=True)

        ex = jnp.where(pm > 0.0, jnp.exp(jnp.minimum(x_raw - m, 0.0)), 0.0)
        den = den + jnp.sum(ex, axis=0, keepdims=True)
        s_num = s_num + jnp.sum(ex * y, axis=0, keepdims=True)
        y_a = y_a + jnp.sum(y, axis=0, keepdims=True)

    has = jnp.where(den > 0.0, 1.0, 0.0)                   # any stored pred?
    inv = pl.reciprocal(jnp.maximum(den, 1e-30), approx=True)
    dnum = 2.0 * s_num * inv * has                         # sum 2*softmax*true
    dden = has + y_a                                       # sum softmax + true

    # accumulate directly into the used output rows (no pad-row concat)
    out_ref[0:1, :] += bce_a
    out_ref[1:2, :] += cor_a
    out_ref[2:3, :] += uni_a
    out_ref[3:4, :] += dnum
    out_ref[4:5, :] += dden


def _choose_seg_tile(em):
    """Lane tile for the seg kernel: <=512 lanes (roofline knee, no vreg
    spills), shrunk if the double-buffered working set would exceed a quarter
    of this generation's VMEM (gen-gated via get_tpu_info; v7x has 64 MiB)."""
    try:
        vmem_cap = int(pltpu.get_tpu_info().vmem_capacity_bytes)
    except Exception:  # pragma: no cover - conservative fallback
        vmem_cap = 64 * 1024 * 1024
    budget = min(vmem_cap // 4, 12 * 1024 * 1024)
    # per lane column: 2 buffers x em x (f32 pred + f32 true + 2 bf16 masks)
    # plus the double-buffered (8, tile) f32 accumulator block.
    per_lane = 2 * em * (4 + 4 + 2 + 2) + 2 * 8 * 4
    tile = (budget // per_lane) // 128 * 128
    return int(max(128, min(512, tile)))


def fused_segmentation_losses(pred_seg, pred_stored, true_seg, true_stored,
                              pred_idx, true_idx, elec_valid):
    """pred_seg/pred_stored: (B, Q, HW); true_seg/true_stored: (B, E, HW);
    pred_idx/true_idx: (B, Em) matched indices; elec_valid: (B, Em) 0/1."""
    B, _, HW = pred_seg.shape
    Em = pred_idx.shape[1]

    # XLA pre-gather of only the matched rows: kernel touches 4*Em rows/tile
    # instead of 2*(Q+E).  Stored masks downcast to bf16 (exact 0/1 values).
    ev = elec_valid[:, :, None]
    pred_g = jnp.take_along_axis(pred_seg, pred_idx[:, :, None], axis=1)
    pmask_g = (jnp.take_along_axis(pred_stored, pred_idx[:, :, None], axis=1)
               * ev).astype(jnp.bfloat16)
    true_g = jnp.take_along_axis(true_seg, true_idx[:, :, None], axis=1)
    tmask_g = (jnp.take_along_axis(true_stored, true_idx[:, :, None], axis=1)
               * ev).astype(jnp.bfloat16)

    tile = _choose_seg_tile(Em)
    hwp = ((HW + tile - 1) // tile) * tile
    if hwp != HW:                 # pad pixels so the tiled pipeline always runs
        pads = ((0, 0), (0, 0), (0, hwp - HW))
        pred_g = jnp.pad(pred_g, pads)
        pmask_g = jnp.pad(pmask_g, pads)
        true_g = jnp.pad(true_g, pads)
        tmask_g = jnp.pad(tmask_g, pads)

    n_tiles = hwp // tile
    # v7x has 2 TensorCores: if B == 1, split the pixel axis into an extra
    # "parallel" grid dimension so both cores get work.
    n_split = 2 if (B == 1 and n_tiles >= 2 and n_tiles % 2 == 0) else 1
    tps = n_tiles // n_split

    in_map = lambda b, s, t: (b, 0, s * tps + t)
    stats = pl.pallas_call(
        functools.partial(_seg_kernel, em=Em),
        out_shape=jax.ShapeDtypeStruct((B, n_split, 8, tile), jnp.float32),
        grid=(B, n_split, tps),
        in_specs=[pl.BlockSpec((None, Em, tile), in_map)] * 4,
        out_specs=pl.BlockSpec((None, None, 8, tile),
                               lambda b, s, t: (b, s, 0, 0)),
        compiler_params=pltpu.CompilerParams(
            dimension_semantics=("parallel", "parallel", "arbitrary")),
    )(pred_g, pmask_g, true_g, tmask_g)

    # tiny finalize in plain jnp: cross-lane/split reduction + guarded ratios
    sums = jnp.sum(stats, axis=(1, 3))                   # (B, 8)
    bce_sum = jnp.sum(sums[:, 0])
    cor_sum = jnp.sum(sums[:, 1])
    uni_sum = jnp.sum(sums[:, 2])
    denom = jnp.maximum(uni_sum, 1.0)                    # guard empty union
    bce_loss = bce_sum / denom
    binary_acc = cor_sum / denom
    # per-batch pooled dice (torch.sparse.sum over dims [1,2,3], then mean)
    dice = 1.0 - (sums[:, 3] + 1.0) / (sums[:, 4] + 1.0)
    dice_loss = jnp.mean(dice)
    return bce_loss, binary_acc, dice_loss


# --------------------------------------------------------------------------
# single fused scalar-stats kernel: class BCE/acc + huber/NLL/MSE + com-MSE
# (3 packed inputs -> low launch/DMA overhead)
# --------------------------------------------------------------------------
def _scalar_stats_kernel(cls_ref, dist_ref, com_ref, out_ref, *, huber_delta):
    # ---- class loss: cls_ref (4, R, 128) rows = logits, labels, weights, valid
    x = cls_ref[0, :, :]
    y = cls_ref[1, :, :]
    w = cls_ref[2, :, :]
    v = cls_ref[3, :, :]
    bce = jnp.maximum(x, 0.0) - x * y + jnp.log1p(jnp.exp(-jnp.abs(x)))
    pb = jnp.where(x > 0.0, 1.0, 0.0)
    correct = jnp.where(pb == y, 1.0, 0.0) * v
    out_ref[0, 0] = jnp.sum(w * bce)        # weighted bce sum
    out_ref[0, 1] = jnp.sum(correct)        # total correct
    out_ref[0, 2] = jnp.sum(y)              # number of positives
    out_ref[0, 3] = jnp.sum(correct * y)    # correct positives

    # ---- distance losses: dist_ref (8, Mp)
    #      rows 0-1 pred xy, 2-3 true xy, 4-6 chol (a, b, c), 7 valid
    p = dist_ref[0:2, :]
    tpt = dist_ref[2:4, :]
    a = dist_ref[4:5, :]
    bb = dist_ref[5:6, :]
    cc = dist_ref[6:7, :]
    vd = dist_ref[7:8, :]
    d = p - tpt
    ad = jnp.abs(d)
    huber = jnp.where(ad <= huber_delta, 0.5 * d * d,
                      huber_delta * (ad - 0.5 * huber_delta))
    out_ref[0, 4] = jnp.sum(huber * vd)     # huber sum
    out_ref[0, 5] = jnp.sum(d * d * vd)     # no-grad MSE sum

    d1 = tpt[0:1, :] - p[0:1, :]
    d2 = tpt[1:2, :] - p[1:2, :]
    z1 = d1 / a
    z2 = (d2 - bb * z1) / cc
    nll = (0.5 * (z1 * z1 + z2 * z2) + jnp.log(a) + jnp.log(cc)
           + jnp.float32(math.log(2.0 * math.pi)))
    nll = jnp.where(jnp.isinf(nll), jnp.float32(1e7), nll)
    out_ref[0, 6] = jnp.sum(nll * vd)       # NLL sum

    # ---- center-of-mass MSE: com_ref (4, Np) rows 0-1 com xy, 2-3 true xy
    dc = com_ref[0:2, :] - com_ref[2:4, :]
    out_ref[0, 7] = jnp.sum(dc * dc)


def scalar_stats(cls_in, dist_in, com_in, huber_delta):
    return pl.pallas_call(
        functools.partial(_scalar_stats_kernel, huber_delta=huber_delta),
        out_shape=jax.ShapeDtypeStruct((1, 8), jnp.float32),
        in_specs=[_VMEM, _VMEM, _VMEM],
        out_specs=_SMEM,
    )(cls_in, dist_in, com_in)[0]


# --------------------------------------------------------------------------
# EMCriterion.forward
# --------------------------------------------------------------------------
def em_criterion_forward(predicted, target, matched_indices, *,
                         no_electron_weight=0.1, huber_delta=0.1):
    f32 = jnp.float32
    pred_logits = predicted["pred_logits"].astype(f32)
    q_offsets = predicted["query_batch_offsets"]
    e_offsets = target["electron_batch_offsets"]
    B = len(matched_indices)

    # ---- matched-index bookkeeping (tiny XLA glue); supports ragged counts ----
    counts = [int(inds.shape[1]) for inds in matched_indices]
    em_max = max(counts)
    pred_idx = jnp.zeros((B, em_max), jnp.int32)
    true_idx = jnp.zeros((B, em_max), jnp.int32)
    elec_valid = jnp.zeros((B, em_max), f32)
    for b, inds in enumerate(matched_indices):
        n = counts[b]
        pred_idx = pred_idx.at[b, :n].set(inds[0].astype(jnp.int32))
        true_idx = true_idx.at[b, :n].set(inds[1].astype(jnp.int32))
        elec_valid = elec_valid.at[b, :n].set(1.0)
    g_pred = jnp.concatenate(
        [inds[0] + off for inds, off in zip(matched_indices, q_offsets)])
    g_true = jnp.concatenate(
        [inds[1] + off for inds, off in zip(matched_indices, e_offsets)])

    # ---- class labels / weights ----
    nq = pred_logits.shape[0]
    labels = jnp.zeros((nq,), f32).at[g_pred].set(1.0)
    weights = jnp.where(labels > 0, 1.0, f32(no_electron_weight))
    valid = jnp.ones((nq,), f32)

    # ---- fused segmentation losses (matched rows pre-gathered in XLA) ----
    bce_loss, binary_acc, dice_loss = fused_segmentation_losses(
        predicted["pred_segmentation_logits"].astype(f32),
        predicted["pred_segmentation_stored"].astype(f32),
        target["segmentation_mask"].astype(f32),
        target["segmentation_mask_stored"].astype(f32),
        pred_idx, true_idx, elec_valid)

    # ---- packed scalar-stat inputs (3 slabs, lane-major, zero padded) ----
    cls_in = jnp.stack([_to_lane_rows(pred_logits), _to_lane_rows(labels),
                        _to_lane_rows(weights), _to_lane_rows(valid)])  # (4,R,128)

    p_sorted = predicted["pred_positions"][g_pred].astype(f32)          # (M, 2)
    chol = predicted["pred_std_dev_cholesky"][g_pred].astype(f32)       # (M, 2, 2)
    t_sorted = target["normalized_incidence_points_xy"][g_true].astype(f32)
    m = p_sorted.shape[0]
    dist_rows = jnp.stack(
        [p_sorted[:, 0], p_sorted[:, 1], t_sorted[:, 0], t_sorted[:, 1],
         chol[:, 0, 0], chol[:, 1, 0], chol[:, 1, 1], jnp.ones((m,), f32)],
        axis=0)                                                         # (8, M)
    dist_in = _pad_last(dist_rows, 128)                                 # (8, Mp)
    pad_fix = 1.0 - dist_in[7:8, :]       # 1 at padded columns, 0 at real ones
    dist_in = dist_in.at[4:5, :].add(pad_fix).at[6:7, :].add(pad_fix)   # a,c -> 1

    com = target["normalized_centers_of_mass_xy"].astype(f32)
    pts = target["normalized_incidence_points_xy"].astype(f32)
    com_in = _pad_last(jnp.concatenate([com.T, pts.T], axis=0), 128)    # (4, Np)

    stats = scalar_stats(cls_in, dist_in, com_in, huber_delta)

    # ---- finalize tiny scalars in jnp (with div-by-zero guards) ----
    n_f = f32(nq)
    cls_loss = stats[0] / n_f
    cls_acc = stats[1] / n_f
    pos = stats[2]
    electron_acc = jnp.where(pos > 0, stats[3] / jnp.maximum(pos, 1.0), f32(0.0))
    neg_cnt = n_f - pos
    no_electron_acc = jnp.where(
        neg_cnt > 0, (stats[1] - stats[3]) / jnp.maximum(neg_cnt, 1.0), f32(0.0))
    huber_loss = stats[4] / f32(max(m * 2, 1))
    model_mse = stats[5] / f32(max(m * 2, 1))
    nll_loss = stats[6] / f32(max(m, 1))
    com_mse = stats[7] / f32(max(com.size, 1))

    loss_dict = {
        "class_loss": cls_loss,
        "bce_loss": bce_loss,
        "dice_loss": dice_loss,
        "incidence_nll_loss": nll_loss,
        "incidence_huber_loss": huber_loss,
    }
    aux_dict = {
        "mse": model_mse,
        "class_acc": cls_acc,
        "electron_acc": electron_acc,
        "no_electron_acc": no_electron_acc,
        "binary_segmentation_acc": binary_acc,
        "com_mse": com_mse,
    }
    # TODO(synk): 'aux_outputs' handling is a python loop re-running the same
    # losses per auxiliary head; omitted from this synthetic example.
    return loss_dict, aux_dict


if __name__ == "__main__":
    key = jax.random.PRNGKey(0)
    ks = jax.random.split(key, 10)
    B, Q, E, H, W = 2, 8, 4, 16, 16
    HW = H * W

    pred_logits = jax.random.normal(ks[0], (B * Q,), jnp.float32)
    pred_positions = jax.random.uniform(ks[1], (B * Q, 2), jnp.float32)
    raw = jax.random.normal(ks[2], (B * Q, 3), jnp.float32)
    chol = jnp.zeros((B * Q, 2, 2), jnp.float32)
    chol = chol.at[:, 0, 0].set(jax.nn.softplus(raw[:, 0]) + 1e-2)
    chol = chol.at[:, 1, 0].set(0.1 * raw[:, 1])
    chol = chol.at[:, 1, 1].set(jax.nn.softplus(raw[:, 2]) + 1e-2)

    # Dense emulation of the sparse segmentation maps in channels-first layout
    # (B, Q, H*W) / (B, E, H*W): the long pixel axis sits on the vector lanes.
    pred_seg_logits = jax.random.normal(ks[3], (B, Q, HW), jnp.float32)
    pred_seg_stored = (jax.random.uniform(ks[4], (B, Q, HW)) < 0.2
                       ).astype(jnp.float32)
    true_seg_stored = (jax.random.uniform(ks[5], (B, E, HW)) < 0.15
                       ).astype(jnp.float32)
    true_seg_vals = true_seg_stored  # binary true segmentation values

    true_positions = jax.random.uniform(ks[6], (B * E, 2), jnp.float32)
    centers_of_mass = true_positions + 0.01 * jax.random.normal(
        ks[7], (B * E, 2), jnp.float32)

    predicted = {
        "pred_logits": pred_logits,
        "query_batch_offsets": jnp.array([0, Q], jnp.int32),
        "pred_positions": pred_positions,
        "pred_std_dev_cholesky": chol,
        "pred_segmentation_logits": pred_seg_logits,
        "pred_segmentation_stored": pred_seg_stored,
    }
    target = {
        "segmentation_mask": true_seg_vals,
        "segmentation_mask_stored": true_seg_stored,
        "normalized_incidence_points_xy": true_positions,
        "normalized_centers_of_mass_xy": centers_of_mass,
        "electron_batch_offsets": jnp.array([0, E], jnp.int32),
    }
    # TODO(synk): Hungarian matcher (scipy linear_sum_assignment) has no Pallas
    # equivalent; deterministic matched indices are supplied instead.
    matched_indices = [
        jnp.array([[2, 5, 1, 7], [0, 1, 2, 3]], jnp.int32),
        jnp.array([[0, 3, 6, 4], [3, 2, 1, 0]], jnp.int32),
    ]

    loss_dict, aux_dict = em_criterion_forward(predicted, target, matched_indices)
    jax.block_until_ready((loss_dict, aux_dict))
    print("KERNEL_OK")
</pallas_src>

<mosaic_0001>
module attributes {stable_mosaic.version = 11 : i64} {
  func.func @_seg_kernel(%arg0: i32, %arg1: i32, %arg2: i32, %arg3: memref<1x4x512xf32, #tpu.memory_space<vmem>>, %arg4: memref<1x4x512xbf16, #tpu.memory_space<vmem>>, %arg5: memref<1x4x512xf32, #tpu.memory_space<vmem>>, %arg6: memref<1x4x512xbf16, #tpu.memory_space<vmem>>, %arg7: memref<1x1x8x512xf32, #tpu.memory_space<vmem>>) attributes {dimension_semantics = [#tpu.dimension_semantics<parallel>, #tpu.dimension_semantics<parallel>, #tpu.dimension_semantics<arbitrary>], iteration_bounds = array<i64: 2, 1, 1>, scalar_prefetch = 0 : i64, scratch_operands = 0 : i64, tpu.core_type = #tpu.core_type<tc>, window_params = [{transform_indices = @transform_0, window_bounds = array<i64: 1, 4, 512>}, {transform_indices = @transform_1, window_bounds = array<i64: 1, 4, 512>}, {transform_indices = @transform_2, window_bounds = array<i64: 1, 4, 512>}, {transform_indices = @transform_3, window_bounds = array<i64: 1, 4, 512>}, {transform_indices = @transform_4, window_bounds = array<i64: 1, 1, 8, 512>}]} {
    %c0_i32 = arith.constant 0 : i32
    %0 = arith.cmpi eq, %arg2, %c0_i32 : i32
    %1 = arith.extui %0 : i1 to i32
    %c0_i32_0 = arith.constant 0 : i32
    %2 = arith.cmpi ne, %1, %c0_i32_0 : i32
    scf.if %2 {
      %cst_79 = arith.constant 0.000000e+00 : f32
      %122 = vector.broadcast %cst_79 : f32 to vector<8x512xf32>
      %c0_80 = arith.constant 0 : index
      %c0_81 = arith.constant 0 : index
      %c0_82 = arith.constant 0 : index
      %c0_83 = arith.constant 0 : index
      %123 = vector.load %arg7[%c0_80, %c0_81, %c0_82, %c0_83] : memref<1x1x8x512xf32, #tpu.memory_space<vmem>>, vector<1x1x8x512xf32>
      %124 = vector.shape_cast %123 : vector<1x1x8x512xf32> to vector<8x512xf32>
      %125 = vector.shape_cast %122 : vector<8x512xf32> to vector<1x1x8x512xf32>
      tpu.vector_store %arg7[%c0_80, %c0_81, %c0_82, %c0_83], %125 {strides = array<i32>} : memref<1x1x8x512xf32, #tpu.memory_space<vmem>>, vector<1x1x8x512xf32>,
    } else {
    }
    %cst = arith.constant -1.000000e+30 : f32
    %3 = vector.broadcast %cst : f32 to vector<1x512xf32>
    %c0 = arith.constant 0 : index
    %c0_1 = arith.constant 0 : index
    %c0_2 = arith.constant 0 : index
    %4 = vector.load %arg3[%c0, %c0_1, %c0_2] : memref<1x4x512xf32, #tpu.memory_space<vmem>>, vector<1x4x512xf32>
    %5 = vector.shape_cast %4 : vector<1x4x512xf32> to vector<4x512xf32>
    %c0_3 = arith.constant 0 : index
    %c0_4 = arith.constant 0 : index
    %c0_5 = arith.constant 0 : index
    %6 = vector.load %arg4[%c0_3, %c0_4, %c0_5] : memref<1x4x512xbf16, #tpu.memory_space<vmem>>, vector<1x4x512xbf16>
    %7 = vector.shape_cast %6 : vector<1x4x512xbf16> to vector<4x512xbf16>
    %8 = arith.extf %7 : vector<4x512xbf16> to vector<4x512xf32>
    %cst_6 = arith.constant 0.000000e+00 : f32
    %9 = vector.broadcast %cst_6 : f32 to vector<4x512xf32>
    %10 = arith.cmpf ogt, %8, %9 : vector<4x512xf32>
    %cst_7 = arith.constant -1.000000e+30 : f32
    %11 = vector.broadcast %cst_7 : f32 to vector<4x512xf32>
    %12 = arith.select %10, %5, %11 : vector<4x512xi1>, vector<4x512xf32>
    %cst_8 = arith.constant dense<0xFF800000> : vector<512xf32>
    %13 = vector.multi_reduction <maximumf>, %12, %cst_8 [0] : vector<4x512xf32> to vector<512xf32>
    %14 = vector.shape_cast %13 : vector<512xf32> to vector<1x512xf32>
    %15 = arith.maximumf %3, %14 : vector<1x512xf32>
    %cst_9 = arith.constant 0.000000e+00 : f32
    %16 = vector.broadcast %cst_9 : f32 to vector<1x512xf32>
    %c0_10 = arith.constant 0 : index
    %c0_11 = arith.constant 0 : index
    %c0_12 = arith.constant 0 : index
    %17 = vector.load %arg3[%c0_10, %c0_11, %c0_12] : memref<1x4x512xf32, #tpu.memory_space<vmem>>, vector<1x4x512xf32>
    %18 = vector.shape_cast %17 : vector<1x4x512xf32> to vector<4x512xf32>
    %c0_13 = arith.constant 0 : index
    %c0_14 = arith.constant 0 : index
    %c0_15 = arith.constant 0 : index
    %19 = vector.load %arg4[%c0_13, %c0_14, %c0_15] : memref<1x4x512xbf16, #tpu.memory_space<vmem>>, vector<1x4x512xbf16>
    %20 = vector.shape_cast %19 : vector<1x4x512xbf16> to vector<4x512xbf16>
    %21 = arith.extf %20 : vector<4x512xbf16> to vector<4x512xf32>
    %c0_16 = arith.constant 0 : index
    %c0_17 = arith.constant 0 : index
    %c0_18 = arith.constant 0 : index
    %22 = vector.load %arg6[%c0_16, %c0_17, %c0_18] : memref<1x4x512xbf16, #tpu.memory_space<vmem>>, vector<1x4x512xbf16>
    %23 = vector.shape_cast %22 : vector<1x4x512xbf16> to vector<4x512xbf16>
    %24 = arith.extf %23 : vector<4x512xbf16> to vector<4x512xf32>
    %25 = arith.mulf %18, %21 : vector<4x512xf32>
    %c0_19 = arith.constant 0 : index
    %c0_20 = arith.constant 0 : index
    %c0_21 = arith.constant 0 : index
    %26 = vector.load %arg5[%c0_19, %c0_20, %c0_21] : memref<1x4x512xf32, #tpu.memory_space<vmem>>, vector<1x4x512xf32>
    %27 = vector.shape_cast %26 : vector<1x4x512xf32> to vector<4x512xf32>
    %28 = arith.mulf %27, %24 : vector<4x512xf32>
    %29 = arith.maximumf %21, %24 : vector<4x512xf32>
    %cst_22 = arith.constant 0.000000e+00 : f32
    %30 = vector.broadcast %cst_22 : f32 to vector<4x512xf32>
    %31 = arith.maximumf %25, %30 : vector<4x512xf32>
    %32 = arith.mulf %25, %28 : vector<4x512xf32>
    %33 = arith.subf %31, %32 : vector<4x512xf32>
    %34 = math.absf %25 : vector<4x512xf32>
    %cst_23 = arith.constant 0.000000e+00 : f32
    %35 = vector.broadcast %cst_23 : f32 to vector<4x512xf32>
    %36 = arith.subf %35, %34 : vector<4x512xf32>
    %37 = math.exp %36 : vector<4x512xf32>
    %38 = math.log1p %37 : vector<4x512xf32>
    %39 = arith.addf %33, %38 : vector<4x512xf32>
    %cst_24 = arith.constant 0.000000e+00 : f32
    %40 = vector.broadcast %cst_24 : f32 to vector<4x512xf32>
    %41 = arith.cmpf ogt, %25, %40 : vector<4x512xf32>
    %cst_25 = arith.constant 1.000000e+00 : f32
    %cst_26 = arith.constant 0.000000e+00 : f32
    %42 = vector.broadcast %cst_25 : f32 to vector<4x512xf32>
    %43 = vector.broadcast %cst_26 : f32 to vector<4x512xf32>
    %44 = arith.select %41, %42, %43 : vector<4x512xi1>, vector<4x512xf32>
    %45 = arith.cmpf oeq, %44, %28 : vector<4x512xf32>
    %cst_27 = arith.constant 1.000000e+00 : f32
    %cst_28 = arith.constant 0.000000e+00 : f32
    %46 = vector.broadcast %cst_27 : f32 to vector<4x512xf32>
    %47 = vector.broadcast %cst_28 : f32 to vector<4x512xf32>
    %48 = arith.select %45, %46, %47 : vector<4x512xi1>, vector<4x512xf32>
    %49 = arith.mulf %29, %39 : vector<4x512xf32>
    %cst_29 = arith.constant dense<0.000000e+00> : vector<512xf32>
    %50 = vector.multi_reduction <add>, %49, %cst_29 [0] : vector<4x512xf32> to vector<512xf32>
    %51 = vector.shape_cast %50 : vector<512xf32> to vector<1x512xf32>
    %52 = arith.addf %16, %51 : vector<1x512xf32>
    %53 = arith.mulf %29, %48 : vector<4x512xf32>
    %cst_30 = arith.constant dense<0.000000e+00> : vector<512xf32>
    %54 = vector.multi_reduction <add>, %53, %cst_30 [0] : vector<4x512xf32> to vector<512xf32>
    %55 = vector.shape_cast %54 : vector<512xf32> to vector<1x512xf32>
    %56 = arith.addf %16, %55 : vector<1x512xf32>
    %cst_31 = arith.constant dense<0.000000e+00> : vector<512xf32>
    %57 = vector.multi_reduction <add>, %29, %cst_31 [0] : vector<4x512xf32> to vector<512xf32>
    %58 = vector.shape_cast %57 : vector<512xf32> to vector<1x512xf32>
    %59 = arith.addf %16, %58 : vector<1x512xf32>
    %cst_32 = arith.constant 0.000000e+00 : f32
    %60 = vector.broadcast %cst_32 : f32 to vector<4x512xf32>
    %61 = arith.cmpf ogt, %21, %60 : vector<4x512xf32>
    %62 = vector.broadcast %15 : vector<1x512xf32> to vector<4x512xf32>
    %63 = arith.subf %18, %62 : vector<4x512xf32>
    %cst_33 = arith.constant 0.000000e+00 : f32
    %64 = vector.broadcast %cst_33 : f32 to vector<4x512xf32>
    %65 = arith.minimumf %63, %64 : vector<4x512xf32>
    %66 = math.exp %65 : vector<4x512xf32>
    %cst_34 = arith.constant 0.000000e+00 : f32
    %67 = vector.broadcast %cst_34 : f32 to vector<4x512xf32>
    %68 = arith.select %61, %66, %67 : vector<4x512xi1>, vector<4x512xf32>
    %cst_35 = arith.constant dense<0.000000e+00> : vector<512xf32>
    %69 = vector.multi_reduction <add>, %68, %cst_35 [0] : vector<4x512xf32> to vector<512xf32>
    %70 = vector.shape_cast %69 : vector<512xf32> to vector<1x512xf32>
    %71 = arith.addf %16, %70 : vector<1x512xf32>
    %72 = arith.mulf %68, %28 : vector<4x512xf32>
    %cst_36 = arith.constant dense<0.000000e+00> : vector<512xf32>
    %73 = vector.multi_reduction <add>, %72, %cst_36 [0] : vector<4x512xf32> to vector<512xf32>
    %74 = vector.shape_cast %73 : vector<512xf32> to vector<1x512xf32>
    %75 = arith.addf %16, %74 : vector<1x512xf32>
    %cst_37 = arith.constant dense<0.000000e+00> : vector<512xf32>
    %76 = vector.multi_reduction <add>, %28, %cst_37 [0] : vector<4x512xf32> to vector<512xf32>
    %77 = vector.shape_cast %76 : vector<512xf32> to vector<1x512xf32>
    %78 = arith.addf %16, %77 : vector<1x512xf32>
    %cst_38 = arith.constant 0.000000e+00 : f32
    %79 = vector.broadcast %cst_38 : f32 to vector<1x512xf32>
    %80 = arith.cmpf ogt, %71, %79 : vector<1x512xf32>
    %cst_39 = arith.constant 1.000000e+00 : f32
    %cst_40 = arith.constant 0.000000e+00 : f32
    %81 = vector.broadcast %cst_39 : f32 to vector<1x512xf32>
    %82 = vector.broadcast %cst_40 : f32 to vector<1x512xf32>
    %83 = arith.select %80, %81, %82 : vector<1x512xi1>, vector<1x512xf32>
    %cst_41 = arith.constant 1.000000e-30 : f32
    %84 = vector.broadcast %cst_41 : f32 to vector<1x512xf32>
    %85 = arith.maximumf %71, %84 : vector<1x512xf32>
    %86 = tpu.reciprocal %85 {approx = true} : vector<1x512xf32> -> vector<1x512xf32>
    %cst_42 = arith.constant 2.000000e+00 : f32
    %87 = vector.broadcast %cst_42 : f32 to vector<1x512xf32>
    %88 = arith.mulf %87, %75 : vector<1x512xf32>
    %89 = arith.mulf %88, %86 : vector<1x512xf32>
    %90 = arith.mulf %89, %83 : vector<1x512xf32>
    %91 = arith.addf %83, %78 : vector<1x512xf32>
    %c0_43 = arith.constant 0 : index
    %c0_44 = arith.constant 0 : index
    %c0_45 = arith.constant 0 : index
    %c0_46 = arith.constant 0 : index
    %92 = vector.load %arg7[%c0_43, %c0_44, %c0_45, %c0_46] : memref<1x1x8x512xf32, #tpu.memory_space<vmem>>, vector<1x1x1x512xf32>
    %93 = vector.shape_cast %92 : vector<1x1x1x512xf32> to vector<1x512xf32>
    %94 = arith.addf %93, %52 : vector<1x512xf32>
    %c0_47 = arith.constant 0 : index
    %c0_48 = arith.constant 0 : index
    %c0_49 = arith.constant 0 : index
    %c0_50 = arith.constant 0 : index
    %95 = vector.load %arg7[%c0_47, %c0_48, %c0_49, %c0_50] : memref<1x1x8x512xf32, #tpu.memory_space<vmem>>, vector<1x1x1x512xf32>
    %96 = vector.shape_cast %95 : vector<1x1x1x512xf32> to vector<1x512xf32>
    %97 = vector.shape_cast %94 : vector<1x512xf32> to vector<1x1x1x512xf32>
    tpu.vector_store %arg7[%c0_47, %c0_48, %c0_49, %c0_50], %97 {strides = array<i32>} : memref<1x1x8x512xf32, #tpu.memory_space<vmem>>, vector<1x1x1x512xf32>,
    %c0_51 = arith.constant 0 : index
    %c0_52 = arith.constant 0 : index
    %c1 = arith.constant 1 : index
    %c0_53 = arith.constant 0 : index
    %98 = vector.load %arg7[%c0_51, %c0_52, %c1, %c0_53] : memref<1x1x8x512xf32, #tpu.memory_space<vmem>>, vector<1x1x1x512xf32>
    %99 = vector.shape_cast %98 : vector<1x1x1x512xf32> to vector<1x512xf32>
    %100 = arith.addf %99, %56 : vector<1x512xf32>
    %c0_54 = arith.constant 0 : index
    %c0_55 = arith.constant 0 : index
    %c1_56 = arith.constant 1 : index
    %c0_57 = arith.constant 0 : index
    %101 = vector.load %arg7[%c0_54, %c0_55, %c1_56, %c0_57] : memref<1x1x8x512xf32, #tpu.memory_space<vmem>>, vector<1x1x1x512xf32>
    %102 = vector.shape_cast %101 : vector<1x1x1x512xf32> to vector<1x512xf32>
    %103 = vector.shape_cast %100 : vector<1x512xf32> to vector<1x1x1x512xf32>
    tpu.vector_store %arg7[%c0_54, %c0_55, %c1_56, %c0_57], %103 {strides = array<i32>} : memref<1x1x8x512xf32, #tpu.memory_space<vmem>>, vector<1x1x1x512xf32>,
    %c0_58 = arith.constant 0 : index
    %c0_59 = arith.constant 0 : index
    %c2 = arith.constant 2 : index
    %c0_60 = arith.constant 0 : index
    %104 = vector.load %arg7[%c0_58, %c0_59, %c2, %c0_60] : memref<1x1x8x512xf32, #tpu.memory_space<vmem>>, vector<1x1x1x512xf32>
    %105 = vector.shape_cast %104 : vector<1x1x1x512xf32> to vector<1x512xf32>
    %106 = arith.addf %105, %59 : vector<1x512xf32>
    %c0_61 = arith.constant 0 : index
    %c0_62 = arith.constant 0 : index
    %c2_63 = arith.constant 2 : index
    %c0_64 = arith.constant 0 : index
    %107 = vector.load %arg7[%c0_61, %c0_62, %c2_63, %c0_64] : memref<1x1x8x512xf32, #tpu.memory_space<vmem>>, vector<1x1x1x512xf32>
    %108 = vector.shape_cast %107 : vector<1x1x1x512xf32> to vector<1x512xf32>
    %109 = vector.shape_cast %106 : vector<1x512xf32> to vector<1x1x1x512xf32>
    tpu.vector_store %arg7[%c0_61, %c0_62, %c2_63, %c0_64], %109 {strides = array<i32>} : memref<1x1x8x512xf32, #tpu.memory_space<vmem>>, vector<1x1x1x512xf32>,
    %c0_65 = arith.constant 0 : index
    %c0_66 = arith.constant 0 : index
    %c3 = arith.constant 3 : index
    %c0_67 = arith.constant 0 : index
    %110 = vector.load %arg7[%c0_65, %c0_66, %c3, %c0_67] : memref<1x1x8x512xf32, #tpu.memory_space<vmem>>, vector<1x1x1x512xf32>
    %111 = vector.shape_cast %110 : vector<1x1x1x512xf32> to vector<1x512xf32>
    %112 = arith.addf %111, %90 : vector<1x512xf32>
    %c0_68 = arith.constant 0 : index
    %c0_69 = arith.constant 0 : index
    %c3_70 = arith.constant 3 : index
    %c0_71 = arith.constant 0 : index
    %113 = vector.load %arg7[%c0_68, %c0_69, %c3_70, %c0_71] : memref<1x1x8x512xf32, #tpu.memory_space<vmem>>, vector<1x1x1x512xf32>
    %114 = vector.shape_cast %113 : vector<1x1x1x512xf32> to vector<1x512xf32>
    %115 = vector.shape_cast %112 : vector<1x512xf32> to vector<1x1x1x512xf32>
    tpu.vector_store %arg7[%c0_68, %c0_69, %c3_70, %c0_71], %115 {strides = array<i32>} : memref<1x1x8x512xf32, #tpu.memory_space<vmem>>, vector<1x1x1x512xf32>,
    %c0_72 = arith.constant 0 : index
    %c0_73 = arith.constant 0 : index
    %c4 = arith.constant 4 : index
    %c0_74 = arith.constant 0 : index
    %116 = vector.load %arg7[%c0_72, %c0_73, %c4, %c0_74] : memref<1x1x8x512xf32, #tpu.memory_space<vmem>>, vector<1x1x1x512xf32>
    %117 = vector.shape_cast %116 : vector<1x1x1x512xf32> to vector<1x512xf32>
    %118 = arith.addf %117, %91 : vector<1x512xf32>
    %c0_75 = arith.constant 0 : index
    %c0_76 = arith.constant 0 : index
    %c4_77 = arith.constant 4 : index
    %c0_78 = arith.constant 0 : index
    %119 = vector.load %arg7[%c0_75, %c0_76, %c4_77, %c0_78] : memref<1x1x8x512xf32, #tpu.memory_space<vmem>>, vector<1x1x1x512xf32>
    %120 = vector.shape_cast %119 : vector<1x1x1x512xf32> to vector<1x512xf32>
    %121 = vector.shape_cast %118 : vector<1x512xf32> to vector<1x1x1x512xf32>
    tpu.vector_store %arg7[%c0_75, %c0_76, %c4_77, %c0_78], %121 {strides = array<i32>} : memref<1x1x8x512xf32, #tpu.memory_space<vmem>>, vector<1x1x1x512xf32>,
    return
  }
  func.func @transform_0(%arg0: i32, %arg1: i32, %arg2: i32) -> (i32, i32, i32) {
    %c1_i32 = arith.constant 1 : i32
    %0 = arith.muli %arg1, %c1_i32 : i32
    %1 = arith.addi %0, %arg2 : i32
    %c0_i32 = arith.constant 0 : i32
    %c0_i32_0 = arith.constant 0 : i32
    return %arg0, %c0_i32, %1 : i32, i32, i32
  }
  func.func @transform_1(%arg0: i32, %arg1: i32, %arg2: i32) -> (i32, i32, i32) {
    %c1_i32 = arith.constant 1 : i32
    %0 = arith.muli %arg1, %c1_i32 : i32
    %1 = arith.addi %0, %arg2 : i32
    %c0_i32 = arith.constant 0 : i32
    %c0_i32_0 = arith.constant 0 : i32
    return %arg0, %c0_i32, %1 : i32, i32, i32
  }
  func.func @transform_2(%arg0: i32, %arg1: i32, %arg2: i32) -> (i32, i32, i32) {
    %c1_i32 = arith.constant 1 : i32
    %0 = arith.muli %arg1, %c1_i32 : i32
    %1 = arith.addi %0, %arg2 : i32
    %c0_i32 = arith.constant 0 : i32
    %c0_i32_0 = arith.constant 0 : i32
    return %arg0, %c0_i32, %1 : i32, i32, i32
  }
  func.func @transform_3(%arg0: i32, %arg1: i32, %arg2: i32) -> (i32, i32, i32) {
    %c1_i32 = arith.constant 1 : i32
    %0 = arith.muli %arg1, %c1_i32 : i32
    %1 = arith.addi %0, %arg2 : i32
    %c0_i32 = arith.constant 0 : i32
    %c0_i32_0 = arith.constant 0 : i32
    return %arg0, %c0_i32, %1 : i32, i32, i32
  }
  func.func @transform_4(%arg0: i32, %arg1: i32, %arg2: i32) -> (i32, i32, i32, i32) {
    %c0_i32 = arith.constant 0 : i32
    %c0_i32_0 = arith.constant 0 : i32
    %c0_i32_1 = arith.constant 0 : i32
    return %arg0, %arg1, %c0_i32, %c0_i32_0 : i32, i32, i32, i32
  }
}

</mosaic_0001>

<llo_original>
// kernel: tpu_custom_call.1
$region0: #{tpu_custom_call.1}
  #allocation0 [shape = 'u32[]', space=smem, size = 0x4, offset = 0x4, fixed_abs, tag = 'smem constant byte address 0x4 - core index']
  #allocation1 [shape = 'u32[72,128]{1,0:T(1,128)}', space=vmem, size = 0x9000, scoped, tag = 'internal scratch']
  %s0 = inlined_call_operand.hbm [shape: f32[2,4,512], index: 0, kind: input, shape index: {}]
  %s1 = inlined_call_operand.hbm [shape: bf16[2,4,512], index: 1, kind: input, shape index: {}]
  %s2 = inlined_call_operand.hbm [shape: f32[2,4,512], index: 2, kind: input, shape index: {}]
  %s3 = inlined_call_operand.hbm [shape: bf16[2,4,512], index: 3, kind: input, shape index: {}]
  %s4 = inlined_call_operand.hbm [shape: f32[2,1,8,512], index: 4, kind: output, shape index: {}]
  %s5 = sld [smem:[#allocation0]]
  $region69: #{tpu_custom_call.1} parent=0
    _
  %s7 = ssub.s32 1, %s5
  %s8 = scalar_select 0, %s7, %s5
  $region1: #{tpu_custom_call.1} parent=0
    #allocation2 [shape = 'u8[16384]{0}', space=vmem, size = 0x4000, scoped, tag = 'input window, operand 0']
    #allocation3 [shape = 's32[2]{0}', space=sflag, size = 0x8, scoped, tag = 'scoped memory for tpu_custom_call.1']
    #allocation4 [shape = 's32[2]{0}', space=sflag, size = 0x8, scoped, tag = 'scoped memory for tpu_custom_call.1']
    #allocation5 [shape = 'u8[8192]{0}', space=vmem, size = 0x2000, scoped, tag = 'input window, operand 1']
    #allocation6 [shape = 's32[2]{0}', space=sflag, size = 0x8, scoped, tag = 'scoped memory for tpu_custom_call.1']
    #allocation7 [shape = 'u8[16384]{0}', space=vmem, size = 0x4000, scoped, tag = 'input window, operand 2']
    #allocation8 [shape = 'u8[8192]{0}', space=vmem, size = 0x2000, scoped, tag = 'input window, operand 3']
    #allocation9 [shape = 's32[2]{0}', space=sflag, size = 0x8, scoped, tag = 'scoped memory for tpu_custom_call.1']
    #allocation10 [shape = 'u8[32768]{0}', space=vmem, size = 0x8000, scoped, tag = 'output window, operand 0']
    %9 = vsyncpa [#allocation3], 0
    %s10 = scalar_lea.sflag [#allocation3], 1
    %11 = vsyncpa %s10, 0
    %12 = vsyncpa [#allocation6], 0
    %s13 = scalar_lea.sflag [#allocation6], 1
    %14 = vsyncpa %s13, 0
    %15 = vsyncpa [#allocation9], 0
    %s16 = scalar_lea.sflag [#allocation9], 1
    %17 = vsyncpa %s16, 0
    %18 = vsyncpa [#allocation4], 0
    %s19 = scalar_lea.sflag [#allocation4], 1
    %20 = vsyncpa %s19, 0
    loop: start=0, step=1, limit=4
    $region2: #{tpu_custom_call.1} parent=1 // loop_pre_header
      _
    $region3: #{tpu_custom_call.1} parent=1 // loop_header
      %s22 = sphi 0, %s26
      %p23 = scmp.ge.s32.totalorder %s22, 4
      %s29 = sphi 0, %s48
      %s30 = sphi 0, %s44
      %s31 = sphi 0, %s40
      %s32 = sphi 0, %s29
      %s33 = sphi 0, %s30
      %s34 = sphi 0, %s31
      %s35 = sphi 0, %s32
      %s36 = sphi 0, %s33
      %s37 = sphi 0, %s34
      %s55 = sphi 0, %s57
      %s58 = sphi 0, %s55
      %s59 = sphi 0, %s58
      %s75 = sphi 0, %s59
      %s85 = sphi 0, %s87
      %s88 = sphi 0, %s85
      %s89 = sphi 0, %s88
      %s105 = sphi 0, %s89
      %s115 = sphi 0, %s117
      %s118 = sphi 0, %s115
      %s119 = sphi 0, %s118
      %s135 = sphi 0, %s119
      %s145 = sphi 0, %s147
      %s148 = sphi 0, %s145
      %s149 = sphi 0, %s148
      %s165 = sphi 0, %s149
      %s173 = sphi 0, %s175
      %s176 = sphi 0, %s173
      %s177 = sphi 0, %s176
      %s193 = sphi 0, %s177
    $region4: #{tpu_custom_call.1} parent=1 // loop_header_branch
      %25 = sbr.rel (%p23) target = $region8
    $region5: #{tpu_custom_call.1} parent=1 // loop_body
      %s27 = ssub.s32 %s22, 1
      %s28 = ssub.s32 %s22, 2
      %s38 = sadd.s32 1, %s31
      %p39 = scmp.ge.s32.totalorder %s38, 1
      %s40 = scalar_select %p39, 0, %s38
      %s41 = sadd.s32 1, %s30
      %s42 = scalar_select %p39, %s41, %s30
      %p43 = scmp.ge.s32.totalorder %s42, 1
      %s44 = scalar_select %p43, 0, %s42
      %s45 = sadd.s32 1, %s29
      %s46 = scalar_select %p43, %s45, %s29
      %p47 = scmp.ge.s32.totalorder %s46, 2
      %s48 = scalar_select %p47, 0, %s46
      %s49 = sadd.s32 %s30, %s31
      %s50 = sadd.s32 %s44, %s40
      %s51 = ssub.s32 %s29, %s48
      %s52 = ssub.s32 %s49, %s50
      %s53 = sor.u32 %s51, %s52
      %p54 = scmp.eq.s32.totalorder %s53, 0
      %s56 = sadd.s32 %s55, 1
      %s57 = scalar_select %p54, %s55, %s56
      %p60 = pneg %p54
      %p61 = scmp.eq.s32.totalorder %s22, 1
      %p62 = por %p60, %p61
      %p63 = scmp.ne.s32.totalorder %s55, %s58
      %p64 = scmp.eq.s32.totalorder %s22, 0
      %p65 = por %p63, %p64
      %p66 = scmp.ne.s32.totalorder %s55, %s58
      %p67 = scmp.eq.s32.totalorder %s27, 1
      %p68 = por %p66, %p67
      %p69 = scmp.ne.s32.totalorder %s58, %s59
      %p70 = scmp.eq.s32.totalorder %s27, 0
      %p71 = por %p69, %p70
      %p72 = scmp.ne.s32.totalorder %s58, %s59
      %p73 = scmp.eq.s32.totalorder %s28, 1
      %p74 = por %p72, %p73
      %p76 = scmp.ne.s32.totalorder %s59, %s75
      %p77 = scmp.eq.s32.totalorder %s28, 0
      %p78 = por %p76, %p77
      %s79 = sadd.s32 %s30, %s31
      %s80 = sadd.s32 %s44, %s40
      %s81 = ssub.s32 %s29, %s48
      %s82 = ssub.s32 %s79, %s80
      %s83 = sor.u32 %s81, %s82
      %p84 = scmp.eq.s32.totalorder %s83, 0
      %s86 = sadd.s32 %s85, 1
      %s87 = scalar_select %p84, %s85, %s86
      %p90 = pneg %p84
      %p91 = scmp.eq.s32.totalorder %s22, 1
      %p92 = por %p90, %p91
      %p93 = scmp.ne.s32.totalorder %s85, %s88
      %p94 = scmp.eq.s32.totalorder %s22, 0
      %p95 = por %p93, %p94
      %p96 = scmp.ne.s32.totalorder %s85, %s88
      %p97 = scmp.eq.s32.totalorder %s27, 1
      %p98 = por %p96, %p97
      %p99 = scmp.ne.s32.totalorder %s88, %s89
      %p100 = scmp.eq.s32.totalorder %s27, 0
      %p101 = por %p99, %p100
      %p102 = scmp.ne.s32.totalorder %s88, %s89
      %p103 = scmp.eq.s32.totalorder %s28, 1
      %p104 = por %p102, %p103
      %p106 = scmp.ne.s32.totalorder %s89, %s105
      %p107 = scmp.eq.s32.totalorder %s28, 0
      %p108 = por %p106, %p107
      %s109 = sadd.s32 %s30, %s31
      %s110 = sadd.s32 %s44, %s40
      %s111 = ssub.s32 %s29, %s48
      %s112 = ssub.s32 %s109, %s110
      %s113 = sor.u32 %s111, %s112
      %p114 = scmp.eq.s32.totalorder %s113, 0
      %s116 = sadd.s32 %s115, 1
      %s117 = scalar_select %p114, %s115, %s116
      %p120 = pneg %p114
      %p121 = scmp.eq.s32.totalorder %s22, 1
      %p122 = por %p120, %p121
      %p123 = scmp.ne.s32.totalorder %s115, %s118
      %p124 = scmp.eq.s32.totalorder %s22, 0
      %p125 = por %p123, %p124
      %p126 = scmp.ne.s32.totalorder %s115, %s118
      %p127 = scmp.eq.s32.totalorder %s27, 1
      %p128 = por %p126, %p127
      %p129 = scmp.ne.s32.totalorder %s118, %s119
      %p130 = scmp.eq.s32.totalorder %s27, 0
      %p131 = por %p129, %p130
      %p132 = scmp.ne.s32.totalorder %s118, %s119
      %p133 = scmp.eq.s32.totalorder %s28, 1
      %p134 = por %p132, %p133
      %p136 = scmp.ne.s32.totalorder %s119, %s135
      %p137 = scmp.eq.s32.totalorder %s28, 0
      %p138 = por %p136, %p137
      %s139 = sadd.s32 %s30, %s31
      %s140 = sadd.s32 %s44, %s40
      %s141 = ssub.s32 %s29, %s48
      %s142 = ssub.s32 %s139, %s140
      %s143 = sor.u32 %s141, %s142
      %p144 = scmp.eq.s32.totalorder %s143, 0
      %s146 = sadd.s32 %s145, 1
      %s147 = scalar_select %p144, %s145, %s146
      %p150 = pneg %p144
      %p151 = scmp.eq.s32.totalorder %s22, 1
      %p152 = por %p150, %p151
      %p153 = scmp.ne.s32.totalorder %s145, %s148
      %p154 = scmp.eq.s32.totalorder %s22, 0
      %p155 = por %p153, %p154
      %p156 = scmp.ne.s32.totalorder %s145, %s148
      %p157 = scmp.eq.s32.totalorder %s27, 1
      %p158 = por %p156, %p157
      %p159 = scmp.ne.s32.totalorder %s148, %s149
      %p160 = scmp.eq.s32.totalorder %s27, 0
      %p161 = por %p159, %p160
      %p162 = scmp.ne.s32.totalorder %s148, %s149
      %p163 = scmp.eq.s32.totalorder %s28, 1
      %p164 = por %p162, %p163
      %p166 = scmp.ne.s32.totalorder %s149, %s165
      %p167 = scmp.eq.s32.totalorder %s28, 0
      %p168 = por %p166, %p167
      %s169 = ssub.s32 %s29, %s48
      %s170 = ssub.s32 %s30, %s44
      %s171 = sor.u32 %s169, %s170
      %p172 = scmp.eq.s32.totalorder %s171, 0
      %s174 = sadd.s32 %s173, 1
      %s175 = scalar_select %p172, %s173, %s174
      %p178 = pneg %p172
      %p179 = scmp.eq.s32.totalorder %s22, 1
      %p180 = por %p178, %p179
      %p181 = scmp.ne.s32.totalorder %s173, %s176
      %p182 = scmp.eq.s32.totalorder %s22, 0
      %p183 = por %p181, %p182
      %p184 = scmp.ne.s32.totalorder %s173, %s176
      %p185 = scmp.eq.s32.totalorder %s27, 1
      %p186 = por %p184, %p185
      %p187 = scmp.ne.s32.totalorder %s176, %s177
      %p188 = scmp.eq.s32.totalorder %s27, 0
      %p189 = por %p187, %p188
      %p190 = scmp.ne.s32.totalorder %s176, %s177
      %p191 = scmp.eq.s32.totalorder %s28, 1
      %p192 = por %p190, %p191
      %p194 = scmp.ne.s32.totalorder %s177, %s193
      %p195 = scmp.eq.s32.totalorder %s28, 0
      %p196 = por %p194, %p195
      %p197 = scmp.le.s32.totalorder 1, %s22
      %p198 = scmp.lt.s32.totalorder %s22, 3
      %p199 = pnand %p197, %p198
      %p200 = pneg %p199
      // Predicated region
      $region9: #{tpu_custom_call.1} parent=5 // pred_check
        _
      $region10: #{tpu_custom_call.1} parent=5 // pred_check_branch
        %202 = sbr.rel (%p199) target = $region12
      $region11: #{tpu_custom_call.1} parent=5 // pred_region
        %s203 = ssub.s32 %s22, 1
      $region12: #{tpu_custom_call.1} parent=5 // pred_fallthru
        _
      %p204 = scmp.lt.s32.totalorder %s22, 2
      // Predicated region
      $region13: #{tpu_custom_call.1} parent=5 // pred_check
        %p205 = pneg %p204
      $region14: #{tpu_custom_call.1} parent=5 // pred_check_branch
        %207 = sbr.rel (%p205) target = $region16
      $region15: #{tpu_custom_call.1} parent=5 // pred_region
        // Predicated region
        $region17: #{tpu_custom_call.1} parent=15 // pred_check
          %p208 = pneg %p65
        $region18: #{tpu_custom_call.1} parent=15 // pred_check_branch
          %210 = sbr.rel (%p208) target = $region20
        $region19: #{tpu_custom_call.1} parent=15 // pred_region
          %s211 = sand.u32 %s55, 1
          %s212 = scalar_lea.sflag [#allocation3], %s211
          %s213 = sand.u32 %s55, 1
          %s214 = smul.addr %s213, 16
          %s215 = scalar_lea.vmem [#allocation2], %s214
          %s216 = sadd.s32 %s30, %s31
          %s217 = smul.u32 4, %s216
          %219 = vsyncadd %s212, 0
          %s220 = smul.addr %s29, 4
          %s221 = sadd.s32 %s217, %s220
          %s222 = smul.addr %s221, 4
          %s223 = scalar_lea.hbm %s0, %s222
          %s225 = sshll.u32 %s223, 4
          %s226 = int_to_ptr.hbm [resolvable:$true] %s225
          %s227 = sshll.u32 %s215, 4
          %s228 = int_to_ptr.vmem [resolvable:$true] %s227
          %230 = dma.hbm_to_vmem [thread:$0]  %s226, 256, %s228, %s212
        $region20: #{tpu_custom_call.1} parent=15 // pred_fallthru
          _
        // Predicated region
        $region21: #{tpu_custom_call.1} parent=15 // pred_check
          %p231 = pneg %p95
        $region22: #{tpu_custom_call.1} parent=15 // pred_check_branch
          %233 = sbr.rel (%p231) target = $region24
        $region23: #{tpu_custom_call.1} parent=15 // pred_region
          %s234 = sand.u32 %s22, 1
          %s235 = scalar_lea.sflag [#allocation6], %s234
          %s236 = sand.u32 %s85, 1
          %s237 = smul.addr %s236, 8
          %s238 = scalar_lea.vmem [#allocation5], %s237
          %s239 = sadd.s32 %s30, %s31
          %s240 = smul.u32 4, %s239
          %242 = vsyncadd %s235, 0
          %s243 = smul.addr %s29, 4
          %s244 = sadd.s32 %s240, %s243
          %s245 = smul.addr %s244, 2
          %s246 = scalar_lea.hbm %s1, %s245
          %s248 = sshll.u32 %s246, 4
          %s249 = int_to_ptr.hbm [resolvable:$true] %s248
          %s250 = sshll.u32 %s238, 4
          %s251 = int_to_ptr.vmem [resolvable:$true] %s250
          %253 = dma.hbm_to_vmem [thread:$0]  %s249, 128, %s251, %s235
        $region24: #{tpu_custom_call.1} parent=15 // pred_fallthru
          _
        // Predicated region
        $region25: #{tpu_custom_call.1} parent=15 // pred_check
          %p254 = pneg %p125
        $region26: #{tpu_custom_call.1} parent=15 // pred_check_branch
          %256 = sbr.rel (%p254) target = $region28
        $region27: #{tpu_custom_call.1} parent=15 // pred_region
          %s257 = sand.u32 %s22, 1
          %s258 = scalar_lea.sflag [#allocation6], %s257
          %s259 = sand.u32 %s115, 1
          %s260 = smul.addr %s259, 16
          %s261 = scalar_lea.vmem [#allocation7], %s260
          %s262 = sadd.s32 %s30, %s31
          %s263 = smul.u32 4, %s262
          %265 = vsyncadd %s258, 0
          %s266 = smul.addr %s29, 4
          %s267 = sadd.s32 %s263, %s266
          %s268 = smul.addr %s267, 4
          %s269 = scalar_lea.hbm %s2, %s268
          %s271 = sshll.u32 %s269, 4
          %s272 = int_to_ptr.hbm [resolvable:$true] %s271
          %s273 = sshll.u32 %s261, 4
          %s274 = int_to_ptr.vmem [resolvable:$true] %s273
          %276 = dma.hbm_to_vmem [thread:$0]  %s272, 256, %s274, %s258
        $region28: #{tpu_custom_call.1} parent=15 // pred_fallthru
          _
        // Predicated region
        $region29: #{tpu_custom_call.1} parent=15 // pred_check
          %p277 = pneg %p155
        $region30: #{tpu_custom_call.1} parent=15 // pred_check_branch
          %279 = sbr.rel (%p277) target = $region32
        $region31: #{tpu_custom_call.1} parent=15 // pred_region
          %s280 = sand.u32 %s145, 1
          %s281 = scalar_lea.sflag [#allocation9], %s280
          %s282 = sand.u32 %s145, 1
          %s283 = smul.addr %s282, 8
          %s284 = scalar_lea.vmem [#allocation8], %s283
          %s285 = sadd.s32 %s30, %s31
          %s286 = smul.u32 4, %s285
          %288 = vsyncadd %s281, 0
          %s289 = smul.addr %s29, 4
          %s290 = sadd.s32 %s286, %s289
          %s291 = smul.addr %s290, 2
          %s292 = scalar_lea.hbm %s3, %s291
          %s294 = sshll.u32 %s292, 4
          %s295 = int_to_ptr.hbm [resolvable:$true] %s294
          %s296 = sshll.u32 %s284, 4
          %s297 = int_to_ptr.vmem [resolvable:$true] %s296
          %299 = dma.hbm_to_vmem [thread:$0]  %s295, 128, %s297, %s281
        $region32: #{tpu_custom_call.1} parent=15 // pred_fallthru
          _
      $region16: #{tpu_custom_call.1} parent=5 // pred_fallthru
        _
      %p300 = scmp.le.s32.totalorder 1, %s22
      %p301 = scmp.lt.s32.totalorder %s22, 3
      %p302 = pnand %p300, %p301
      %p303 = pneg %p302
      // Predicated region
      $region33: #{tpu_custom_call.1} parent=5 // pred_check
        _
      $region34: #{tpu_custom_call.1} parent=5 // pred_check_branch
        %305 = sbr.rel (%p302) target = $region36
      $region35: #{tpu_custom_call.1} parent=5 // pred_region
        %s306 = ssub.s32 %s22, 1
        %s307 = sand.u32 %s58, 1
        %s308 = scalar_lea.sflag [#allocation3], %s307
        %s309 = sand.u32 %s58, 1
        %s310 = smul.addr %s309, 16
        %s311 = scalar_lea.vmem [#allocation2], %s310
        // Predicated region
        $region37: #{tpu_custom_call.1} parent=35 // pred_check
          %p312 = pneg %p71
        $region38: #{tpu_custom_call.1} parent=35 // pred_check_branch
          %314 = sbr.rel (%p312) target = $region40
        $region39: #{tpu_custom_call.1} parent=35 // pred_region
          %316 = dma.done %s308, 256
        $region40: #{tpu_custom_call.1} parent=35 // pred_fallthru
          _
        %s317 = sand.u32 %s27, 1
        %s318 = scalar_lea.sflag [#allocation6], %s317
        %s319 = sand.u32 %s88, 1
        %s320 = smul.addr %s319, 8
        %s321 = scalar_lea.vmem [#allocation5], %s320
        // Predicated region
        $region41: #{tpu_custom_call.1} parent=35 // pred_check
          %p322 = pneg %p101
        $region42: #{tpu_custom_call.1} parent=35 // pred_check_branch
          %324 = sbr.rel (%p322) target = $region44
        $region43: #{tpu_custom_call.1} parent=35 // pred_region
          %326 = dma.done %s318, 128
        $region44: #{tpu_custom_call.1} parent=35 // pred_fallthru
          _
        %s327 = sand.u32 %s27, 1
        %s328 = scalar_lea.sflag [#allocation6], %s327
        %s329 = sand.u32 %s118, 1
        %s330 = smul.addr %s329, 16
        %s331 = scalar_lea.vmem [#allocation7], %s330
        // Predicated region
        $region45: #{tpu_custom_call.1} parent=35 // pred_check
          %p332 = pneg %p131
        $region46: #{tpu_custom_call.1} parent=35 // pred_check_branch
          %334 = sbr.rel (%p332) target = $region48
        $region47: #{tpu_custom_call.1} parent=35 // pred_region
          %336 = dma.done %s328, 256
        $region48: #{tpu_custom_call.1} parent=35 // pred_fallthru
          _
        %s337 = sand.u32 %s148, 1
        %s338 = scalar_lea.sflag [#allocation9], %s337
        %s339 = sand.u32 %s148, 1
        %s340 = smul.addr %s339, 8
        %s341 = scalar_lea.vmem [#allocation8], %s340
        // Predicated region
        $region49: #{tpu_custom_call.1} parent=35 // pred_check
          %p342 = pneg %p161
        $region50: #{tpu_custom_call.1} parent=35 // pred_check_branch
          %344 = sbr.rel (%p342) target = $region52
        $region51: #{tpu_custom_call.1} parent=35 // pred_region
          %346 = dma.done %s338, 128
        $region52: #{tpu_custom_call.1} parent=35 // pred_fallthru
          _
        %s347 = sand.u32 %s58, 1
        %s348 = scalar_lea.sflag [#allocation3], %s347
        %s349 = sand.u32 %s58, 1
        %s350 = smul.addr %s349, 16
        %s351 = scalar_lea.vmem [#allocation2], %s350
        %p352 = pneg %p71
        %p353 = pneg %p68
        %s354 = sand.u32 %s27, 1
        %s355 = scalar_lea.sflag [#allocation6], %s354
        %s356 = sand.u32 %s88, 1
        %s357 = smul.addr %s356, 8
        %s358 = scalar_lea.vmem [#allocation5], %s357
        %p359 = pneg %p101
        %p360 = pneg %p98
        %s361 = sand.u32 %s27, 1
        %s362 = scalar_lea.sflag [#allocation6], %s361
        %s363 = sand.u32 %s118, 1
        %s364 = smul.addr %s363, 16
        %s365 = scalar_lea.vmem [#allocation7], %s364
        %p366 = pneg %p131
        %p367 = pneg %p128
        %s368 = sand.u32 %s148, 1
        %s369 = scalar_lea.sflag [#allocation9], %s368
        %s370 = sand.u32 %s148, 1
        %s371 = smul.addr %s370, 8
        %s372 = scalar_lea.vmem [#allocation8], %s371
        %p373 = pneg %p161
        %p374 = pneg %p158
        %p375 = pneg %p189
        %p376 = pneg %p186
        %s377 = sand.u32 %s176, 1
        %s378 = scalar_lea.sflag [#allocation4], %s377
        %s379 = sand.u32 %s176, 1
        %s380 = smul.addr %s379, 32
        %s381 = scalar_lea.vmem [#allocation10], %s380
        %s382 = sadd.s32 %s33, %s34
        %s383 = smul.u32 4, %s382
        %s384 = sadd.s32 %s33, %s34
        %s385 = smul.u32 4, %s384
        %s386 = sadd.s32 %s33, %s34
        %s387 = smul.u32 4, %s386
        %s388 = sadd.s32 %s33, %s34
        %s389 = smul.u32 4, %s388
        %p390 = scmp.eq.s32.totalorder %s34, 0
        // Predicated region
        $region53: #{tpu_custom_call.1} parent=35 // pred_check
          %p391 = pneg %p390
        $region54: #{tpu_custom_call.1} parent=35 // pred_check_branch
          %393 = sbr.rel (%p391) target = $region56
        $region55: #{tpu_custom_call.1} parent=35 // pred_region
          %394 = vst [vmem:[%s381] sm:$0xff] 0.0
          %395 = vst [vmem:[%s381 + $0x8] sm:$0xff] 0.0
          %396 = vst [vmem:[%s381 + $0x10] sm:$0xff] 0.0
          %397 = vst [vmem:[%s381 + $0x18] sm:$0xff] 0.0
        $region56: #{tpu_custom_call.1} parent=35 // pred_fallthru
          _
        %v398 = vld [vmem:[%s311] sm:$0xff]
        %v399 = vld [vmem:[%s311 + $0x8] sm:$0xff]
        %v400 = vld [vmem:[%s321] sm:$0xff]
        %v401 = vunpack.c.l.bf16 %v400
        %v402 = vunpack.c.h.bf16 %v400
        %vm403 = vcmp.gt.f32.partialorder %v401, 0.0
        %vm404 = vcmp.gt.f32.partialorder %v402, 0.0
        %v405 = vsel %vm403, %v398, -1e+30
        %v406 = vsel %vm404, %v399, -1e+30
        %409 = vst [vmem:[#allocation1] ss:$2 sm:$0xff] %v405
        %s410 = scalar_lea.vmem [#allocation1], 16
        %411 = vst [vmem:[%s410] ss:$2 sm:$0xff] %v406
        %v412 = vld.sshfl [vmem:[#allocation1] sm:$0xff pattern:$0x75316420]
        %v413 = vld.sshfl [vmem:[#allocation1 + $0x8] sm:$0xff pattern:$0x75316420]
        %v414 = vld.sshfl [vmem:[#allocation1 + $0x10] sm:$0xff pattern:$0x75316420]
        %v415 = vld.sshfl [vmem:[#allocation1 + $0x18] sm:$0xff pattern:$0x75316420]
        %vm420 = vcmask 1043456
        %v421 = vsel %vm420, %v412, -inf
        %v422 = vrot.slane %v421, 4
        %v423 = vmax.f32 %v421, %v422
        %v424 = vrot.slane %v423, 2
        %v425 = vmax.f32 %v423, %v424
        %v426 = vrot.slane %v425, 1
        %v427 = vmax.f32 %v425, %v426
        %v428 = vsel %vm420, %v413, -inf
        %v429 = vrot.slane %v428, 4
        %v430 = vmax.f32 %v428, %v429
        %v431 = vrot.slane %v430, 2
        %v432 = vmax.f32 %v430, %v431
        %v433 = vrot.slane %v432, 1
        %v434 = vmax.f32 %v432, %v433
        %v435 = vsel %vm420, %v414, -inf
        %v436 = vrot.slane %v435, 4
        %v437 = vmax.f32 %v435, %v436
        %v438 = vrot.slane %v437, 2
        %v439 = vmax.f32 %v437, %v438
        %v440 = vrot.slane %v439, 1
        %v441 = vmax.f32 %v439, %v440
        %v442 = vsel %vm420, %v415, -inf
        %v443 = vrot.slane %v442, 4
        %v444 = vmax.f32 %v442, %v443
        %v445 = vrot.slane %v444, 2
        %v446 = vmax.f32 %v444, %v445
        %v447 = vrot.slane %v446, 1
        %v448 = vmax.f32 %v446, %v447
        %v449 = vmax.f32 %v427, -1e+30
        %v450 = vmax.f32 %v434, -1e+30
        %v451 = vmax.f32 %v441, -1e+30
        %v452 = vmax.f32 %v448, -1e+30
        %v453 = vld [vmem:[%s341] sm:$0xff]
        %v454 = vunpack.c.l.bf16 %v453
        %v455 = vunpack.c.h.bf16 %v453
        %v456 = vmul.f32 %v398, %v401
        %v457 = vmul.f32 %v399, %v402
        %v458 = vld [vmem:[%s331] sm:$0xff]
        %v459 = vld [vmem:[%s331 + $0x8] sm:$0xff]
        %v460 = vmul.f32 %v458, %v454
        %v461 = vmul.f32 %v459, %v455
        %v462 = vmax.f32 %v401, %v454
        %v463 = vmax.f32 %v402, %v455
        %v464 = vmax.f32 %v456, 0.0
        %v465 = vmax.f32 %v457, 0.0
        %v466 = vmul.f32 %v456, %v460
        %v467 = vmul.f32 %v457, %v461
        %v468 = vsub.f32 %v464, %v466
        %v469 = vsub.f32 %v465, %v467
        %v470 = vand.u32 2147483647, %v456
        %v471 = vand.u32 2147483647, %v457
        %v472 = vsub.f32 0.0, %v470
        %v473 = vsub.f32 0.0, %v471
        %v474 = vmul.f32 %v472, 1.442695
        %v475 = vpow.pop %v474
        %v476 = vmul.f32 %v473, 1.442695
        %v477 = vpow.pop %v476
        %v478 = vadd.f32 %v475, 1.0
        %v479 = vlog2.pop %v478
        %v480 = vmul.f32 %v479, 0.6931472
        %v481 = vmul.f32 -0.5, %v475
        %v482 = vadd.f32 %v481, 1.0
        %v483 = vmul.f32 %v482, %v475
        %v484 = vand.u32 2147483647, %v475
        %vm485 = vcmp.lt.f32.partialorder %v484, 0.0004427343
        %v486 = vsel %vm485, %v483, %v480
        %v487 = vadd.f32 %v477, 1.0
        %v488 = vlog2.pop %v487
        %v489 = vmul.f32 %v488, 0.6931472
        %v490 = vmul.f32 -0.5, %v477
        %v491 = vadd.f32 %v490, 1.0
        %v492 = vmul.f32 %v491, %v477
        %v493 = vand.u32 2147483647, %v477
        %vm494 = vcmp.lt.f32.partialorder %v493, 0.0004427343
        %v495 = vsel %vm494, %v492, %v489
        %v496 = vadd.f32 %v468, %v486
        %v497 = vadd.f32 %v469, %v495
        %vm498 = vcmp.gt.f32.partialorder %v456, 0.0
        %vm499 = vcmp.gt.f32.partialorder %v457, 0.0
        %v500 = vsel %vm498, 1.0, 0.0
        %v501 = vsel %vm499, 1.0, 0.0
        %vm502 = vcmp.eq.f32.partialorder %v500, %v460
        %vm503 = vcmp.eq.f32.partialorder %v501, %v461
        %v504 = vsel %vm502, 1.0, 0.0
        %v505 = vsel %vm503, 1.0, 0.0
        %v506 = vmul.f32 %v462, %v496
        %v507 = vmul.f32 %v463, %v497
        %510 = vst [vmem:[#allocation1] ss:$2 sm:$0xff] %v506
        %s511 = scalar_lea.vmem [#allocation1], 16
        %512 = vst [vmem:[%s511] ss:$2 sm:$0xff] %v507
        %v513 = vld.sshfl [vmem:[#allocation1] sm:$0xff pattern:$0x75316420]
        %v514 = vld.sshfl [vmem:[#allocation1 + $0x8] sm:$0xff pattern:$0x75316420]
        %v515 = vld.sshfl [vmem:[#allocation1 + $0x10] sm:$0xff pattern:$0x75316420]
        %v516 = vld.sshfl [vmem:[#allocation1 + $0x18] sm:$0xff pattern:$0x75316420]
        %v521 = vsel %vm420, %v513, 0.0
        %v522 = vrot.slane %v521, 4
        %v523 = vadd.f32 %v521, %v522
        %v524 = vrot.slane %v523, 2
        %v525 = vadd.f32 %v523, %v524
        %v526 = vrot.slane %v525, 1
        %v527 = vadd.f32 %v525, %v526
        %v528 = vsel %vm420, %v514, 0.0
        %v529 = vrot.slane %v528, 4
        %v530 = vadd.f32 %v528, %v529
        %v531 = vrot.slane %v530, 2
        %v532 = vadd.f32 %v530, %v531
        %v533 = vrot.slane %v532, 1
        %v534 = vadd.f32 %v532, %v533
        %v535 = vsel %vm420, %v515, 0.0
        %v536 = vrot.slane %v535, 4
        %v537 = vadd.f32 %v535, %v536
        %v538 = vrot.slane %v537, 2
        %v539 = vadd.f32 %v537, %v538
        %v540 = vrot.slane %v539, 1
        %v541 = vadd.f32 %v539, %v540
        %v542 = vsel %vm420, %v516, 0.0
        %v543 = vrot.slane %v542, 4
        %v544 = vadd.f32 %v542, %v543
        %v545 = vrot.slane %v544, 2
        %v546 = vadd.f32 %v544, %v545
        %v547 = vrot.slane %v546, 1
        %v548 = vadd.f32 %v546, %v547
        %v549 = vadd.f32 %v527, 0.0
        %v550 = vadd.f32 %v534, 0.0
        %v551 = vadd.f32 %v541, 0.0
        %v552 = vadd.f32 %v548, 0.0
        %v553 = vmul.f32 %v462, %v504
        %v554 = vmul.f32 %v463, %v505
        %557 = vst [vmem:[#allocation1] ss:$2 sm:$0xff] %v553
        %s558 = scalar_lea.vmem [#allocation1], 16
        %559 = vst [vmem:[%s558] ss:$2 sm:$0xff] %v554
        %v560 = vld.sshfl [vmem:[#allocation1] sm:$0xff pattern:$0x75316420]
        %v561 = vld.sshfl [vmem:[#allocation1 + $0x8] sm:$0xff pattern:$0x75316420]
        %v562 = vld.sshfl [vmem:[#allocation1 + $0x10] sm:$0xff pattern:$0x75316420]
        %v563 = vld.sshfl [vmem:[#allocation1 + $0x18] sm:$0xff pattern:$0x75316420]
        %v568 = vsel %vm420, %v560, 0.0
        %v569 = vrot.slane %v568, 4
        %v570 = vadd.f32 %v568, %v569
        %v571 = vrot.slane %v570, 2
        %v572 = vadd.f32 %v570, %v571
        %v573 = vrot.slane %v572, 1
        %v574 = vadd.f32 %v572, %v573
        %v575 = vsel %vm420, %v561, 0.0
        %v576 = vrot.slane %v575, 4
        %v577 = vadd.f32 %v575, %v576
        %v578 = vrot.slane %v577, 2
        %v579 = vadd.f32 %v577, %v578
        %v580 = vrot.slane %v579, 1
        %v581 = vadd.f32 %v579, %v580
        %v582 = vsel %vm420, %v562, 0.0
        %v583 = vrot.slane %v582, 4
        %v584 = vadd.f32 %v582, %v583
        %v585 = vrot.slane %v584, 2
        %v586 = vadd.f32 %v584, %v585
        %v587 = vrot.slane %v586, 1
        %v588 = vadd.f32 %v586, %v587
        %v589 = vsel %vm420, %v563, 0.0
        %v590 = vrot.slane %v589, 4
        %v591 = vadd.f32 %v589, %v590
        %v592 = vrot.slane %v591, 2
        %v593 = vadd.f32 %v591, %v592
        %v594 = vrot.slane %v593, 1
        %v595 = vadd.f32 %v593, %v594
        %v596 = vadd.f32 %v574, 0.0
        %v597 = vadd.f32 %v581, 0.0
        %v598 = vadd.f32 %v588, 0.0
        %v599 = vadd.f32 %v595, 0.0
        %602 = vst [vmem:[#allocation1] ss:$2 sm:$0xff] %v462
        %s603 = scalar_lea.vmem [#allocation1], 16
        %604 = vst [vmem:[%s603] ss:$2 sm:$0xff] %v463
        %v605 = vld.sshfl [vmem:[#allocation1] sm:$0xff pattern:$0x75316420]
        %v606 = vld.sshfl [vmem:[#allocation1 + $0x8] sm:$0xff pattern:$0x75316420]
        %v607 = vld.sshfl [vmem:[#allocation1 + $0x10] sm:$0xff pattern:$0x75316420]
        %v608 = vld.sshfl [vmem:[#allocation1 + $0x18] sm:$0xff pattern:$0x75316420]
        %v613 = vsel %vm420, %v605, 0.0
        %v614 = vrot.slane %v613, 4
        %v615 = vadd.f32 %v613, %v614
        %v616 = vrot.slane %v615, 2
        %v617 = vadd.f32 %v615, %v616
        %v618 = vrot.slane %v617, 1
        %v619 = vadd.f32 %v617, %v618
        %v620 = vsel %vm420, %v606, 0.0
        %v621 = vrot.slane %v620, 4
        %v622 = vadd.f32 %v620, %v621
        %v623 = vrot.slane %v622, 2
        %v624 = vadd.f32 %v622, %v623
        %v625 = vrot.slane %v624, 1
        %v626 = vadd.f32 %v624, %v625
        %v627 = vsel %vm420, %v607, 0.0
        %v628 = vrot.slane %v627, 4
        %v629 = vadd.f32 %v627, %v628
        %v630 = vrot.slane %v629, 2
        %v631 = vadd.f32 %v629, %v630
        %v632 = vrot.slane %v631, 1
        %v633 = vadd.f32 %v631, %v632
        %v634 = vsel %vm420, %v608, 0.0
        %v635 = vrot.slane %v634, 4
        %v636 = vadd.f32 %v634, %v635
        %v637 = vrot.slane %v636, 2
        %v638 = vadd.f32 %v636, %v637
        %v639 = vrot.slane %v638, 1
        %v640 = vadd.f32 %v638, %v639
        %v641 = vadd.f32 %v619, 0.0
        %v642 = vadd.f32 %v626, 0.0
        %v643 = vadd.f32 %v633, 0.0
        %v644 = vadd.f32 %v640, 0.0
        %v649 = vrot.slane %v450, 4
        %v650 = vrot.slane %v452, 4
        %v651 = vsel %vm420, %v449, %v649
        %v652 = vsel %vm420, %v451, %v650
        %v655 = vsub.f32 %v398, %v651
        %v656 = vsub.f32 %v399, %v652
        %v657 = vmin.f32 %v655, 0.0
        %v658 = vmin.f32 %v656, 0.0
        %v659 = vmul.f32 %v657, 1.442695
        %v660 = vpow.pop %v659
        %v661 = vmul.f32 %v658, 1.442695
        %v662 = vpow.pop %v661
        %v663 = vsel %vm403, %v660, 0.0
        %v664 = vsel %vm404, %v662, 0.0
        %667 = vst [vmem:[#allocation1] ss:$2 sm:$0xff] %v663
        %s668 = scalar_lea.vmem [#allocation1], 16
        %669 = vst [vmem:[%s668] ss:$2 sm:$0xff] %v664
        %v670 = vld.sshfl [vmem:[#allocation1] sm:$0xff pattern:$0x75316420]
        %v671 = vld.sshfl [vmem:[#allocation1 + $0x8] sm:$0xff pattern:$0x75316420]
        %v672 = vld.sshfl [vmem:[#allocation1 + $0x10] sm:$0xff pattern:$0x75316420]
        %v673 = vld.sshfl [vmem:[#allocation1 + $0x18] sm:$0xff pattern:$0x75316420]
        %v678 = vsel %vm420, %v670, 0.0
        %v679 = vrot.slane %v678, 4
        %v680 = vadd.f32 %v678, %v679
        %v681 = vrot.slane %v680, 2
        %v682 = vadd.f32 %v680, %v681
        %v683 = vrot.slane %v682, 1
        %v684 = vadd.f32 %v682, %v683
        %v685 = vsel %vm420, %v671, 0.0
        %v686 = vrot.slane %v685, 4
        %v687 = vadd.f32 %v685, %v686
        %v688 = vrot.slane %v687, 2
        %v689 = vadd.f32 %v687, %v688
        %v690 = vrot.slane %v689, 1
        %v691 = vadd.f32 %v689, %v690
        %v692 = vsel %vm420, %v672, 0.0
        %v693 = vrot.slane %v692, 4
        %v694 = vadd.f32 %v692, %v693
        %v695 = vrot.slane %v694, 2
        %v696 = vadd.f32 %v694, %v695
        %v697 = vrot.slane %v696, 1
        %v698 = vadd.f32 %v696, %v697
        %v699 = vsel %vm420, %v673, 0.0
        %v700 = vrot.slane %v699, 4
        %v701 = vadd.f32 %v699, %v700
        %v702 = vrot.slane %v701, 2
        %v703 = vadd.f32 %v701, %v702
        %v704 = vrot.slane %v703, 1
        %v705 = vadd.f32 %v703, %v704
        %v706 = vadd.f32 %v684, 0.0
        %v707 = vadd.f32 %v691, 0.0
        %v708 = vadd.f32 %v698, 0.0
        %v709 = vadd.f32 %v705, 0.0
        %v710 = vmul.f32 %v663, %v460
        %v711 = vmul.f32 %v664, %v461
        %714 = vst [vmem:[#allocation1] ss:$2 sm:$0xff] %v710
        %s715 = scalar_lea.vmem [#allocation1], 16
        %716 = vst [vmem:[%s715] ss:$2 sm:$0xff] %v711
        %v717 = vld.sshfl [vmem:[#allocation1] sm:$0xff pattern:$0x75316420]
        %v718 = vld.sshfl [vmem:[#allocation1 + $0x8] sm:$0xff pattern:$0x75316420]
        %v719 = vld.sshfl [vmem:[#allocation1 + $0x10] sm:$0xff pattern:$0x75316420]
        %v720 = vld.sshfl [vmem:[#allocation1 + $0x18] sm:$0xff pattern:$0x75316420]
        %v725 = vsel %vm420, %v717, 0.0
        %v726 = vrot.slane %v725, 4
        %v727 = vadd.f32 %v725, %v726
        %v728 = vrot.slane %v727, 2
        %v729 = vadd.f32 %v727, %v728
        %v730 = vrot.slane %v729, 1
        %v731 = vadd.f32 %v729, %v730
        %v732 = vsel %vm420, %v718, 0.0
        %v733 = vrot.slane %v732, 4
        %v734 = vadd.f32 %v732, %v733
        %v735 = vrot.slane %v734, 2
        %v736 = vadd.f32 %v734, %v735
        %v737 = vrot.slane %v736, 1
        %v738 = vadd.f32 %v736, %v737
        %v739 = vsel %vm420, %v719, 0.0
        %v740 = vrot.slane %v739, 4
        %v741 = vadd.f32 %v739, %v740
        %v742 = vrot.slane %v741, 2
        %v743 = vadd.f32 %v741, %v742
        %v744 = vrot.slane %v743, 1
        %v745 = vadd.f32 %v743, %v744
        %v746 = vsel %vm420, %v720, 0.0
        %v747 = vrot.slane %v746, 4
        %v748 = vadd.f32 %v746, %v747
        %v749 = vrot.slane %v748, 2
        %v750 = vadd.f32 %v748, %v749
        %v751 = vrot.slane %v750, 1
        %v752 = vadd.f32 %v750, %v751
        %v753 = vadd.f32 %v731, 0.0
        %v754 = vadd.f32 %v738, 0.0
        %v755 = vadd.f32 %v745, 0.0
        %v756 = vadd.f32 %v752, 0.0
        %759 = vst [vmem:[#allocation1] ss:$2 sm:$0xff] %v460
        %s760 = scalar_lea.vmem [#allocation1], 16
        %761 = vst [vmem:[%s760] ss:$2 sm:$0xff] %v461
        %v762 = vld.sshfl [vmem:[#allocation1] sm:$0xff pattern:$0x75316420]
        %v763 = vld.sshfl [vmem:[#allocation1 + $0x8] sm:$0xff pattern:$0x75316420]
        %v764 = vld.sshfl [vmem:[#allocation1 + $0x10] sm:$0xff pattern:$0x75316420]
        %v765 = vld.sshfl [vmem:[#allocation1 + $0x18] sm:$0xff pattern:$0x75316420]
        %v770 = vsel %vm420, %v762, 0.0
        %v771 = vrot.slane %v770, 4
        %v772 = vadd.f32 %v770, %v771
        %v773 = vrot.slane %v772, 2
        %v774 = vadd.f32 %v772, %v773
        %v775 = vrot.slane %v774, 1
        %v776 = vadd.f32 %v774, %v775
        %v777 = vsel %vm420, %v763, 0.0
        %v778 = vrot.slane %v777, 4
        %v779 = vadd.f32 %v777, %v778
        %v780 = vrot.slane %v779, 2
        %v781 = vadd.f32 %v779, %v780
        %v782 = vrot.slane %v781, 1
        %v783 = vadd.f32 %v781, %v782
        %v784 = vsel %vm420, %v764, 0.0
        %v785 = vrot.slane %v784, 4
        %v786 = vadd.f32 %v784, %v785
        %v787 = vrot.slane %v786, 2
        %v788 = vadd.f32 %v786, %v787
        %v789 = vrot.slane %v788, 1
        %v790 = vadd.f32 %v788, %v789
        %v791 = vsel %vm420, %v765, 0.0
        %v792 = vrot.slane %v791, 4
        %v793 = vadd.f32 %v791, %v792
        %v794 = vrot.slane %v793, 2
        %v795 = vadd.f32 %v793, %v794
        %v796 = vrot.slane %v795, 1
        %v797 = vadd.f32 %v795, %v796
        %v798 = vadd.f32 %v776, 0.0
        %v799 = vadd.f32 %v783, 0.0
        %v800 = vadd.f32 %v790, 0.0
        %v801 = vadd.f32 %v797, 0.0
        %vm802 = vcmp.gt.f32.partialorder %v706, 0.0
        %vm803 = vcmp.gt.f32.partialorder %v707, 0.0
        %vm804 = vcmp.gt.f32.partialorder %v708, 0.0
        %vm805 = vcmp.gt.f32.partialorder %v709, 0.0
        %v806 = vsel %vm802, 1.0, 0.0
        %v807 = vsel %vm803, 1.0, 0.0
        %v808 = vsel %vm804, 1.0, 0.0
        %v809 = vsel %vm805, 1.0, 0.0
        %v810 = vmax.f32 %v706, 1e-30
        %v811 = vmax.f32 %v707, 1e-30
        %v812 = vmax.f32 %v708, 1e-30
        %v813 = vmax.f32 %v709, 1e-30
        %v814 = vrcp.pop %v810
        %v815 = vrcp.pop %v811
        %v816 = vrcp.pop %v812
        %v817 = vrcp.pop %v813
        %v818 = vmul.f32 %v753, 2.0
        %v819 = vmul.f32 %v754, 2.0
        %v820 = vmul.f32 %v755, 2.0
        %v821 = vmul.f32 %v756, 2.0
        %v822 = vmul.f32 %v818, %v814
        %v823 = vmul.f32 %v819, %v815
        %v824 = vmul.f32 %v820, %v816
        %v825 = vmul.f32 %v821, %v817
        %v826 = vmul.f32 %v822, %v806
        %v827 = vmul.f32 %v823, %v807
        %v828 = vmul.f32 %v824, %v808
        %v829 = vmul.f32 %v825, %v809
        %v830 = vadd.f32 %v806, %v798
        %v831 = vadd.f32 %v807, %v799
        %v832 = vadd.f32 %v808, %v800
        %v833 = vadd.f32 %v809, %v801
        %v834 = vld [vmem:[%s381] ss:$8 sm:$0xf]
        %v839 = vrot.slane %v550, 7
        %v840 = vrot.slane %v551, 6
        %v841 = vrot.slane %v552, 5
        %vm842 = vcmask 1040384
        %v843 = vsel %vm842, %v549, %v839
        %vm844 = vcmask 1042434
        %v845 = vsel %vm844, %v840, %v841
        %vm846 = vcmask 1041408
        %v847 = vsel %vm846, %v843, %v845
        %v849 = vadd.f32 %v834, %v847
        %v850 = vlaneseq
        %vm851 = vcmp.ge.s32.totalorder %v850, 0
        %vm852 = vcmp.lt.s32.totalorder %v850, 512
        %vm853 = vmand %vm851, %vm852
        %854 = vst.msk [vmem:[%s381] ss:$8 sm:$0xf] %vm853, %v849
        %855 = vst.msk [vmem:[%s381] ss:$8 sm:$0x0] %vm853, %v849
        %s856 = scalar_lea.vmem %s381, 1 [#allocation10]
        %v857 = vld [vmem:[%s856] ss:$8 sm:$0xf]
        %v862 = vrot.slane %v597, 7
        %v863 = vrot.slane %v598, 6
        %v864 = vrot.slane %v599, 5
        %v865 = vsel %vm842, %v596, %v862
        %v866 = vsel %vm844, %v863, %v864
        %v867 = vsel %vm846, %v865, %v866
        %v869 = vadd.f32 %v857, %v867
        %870 = vst.msk [vmem:[%s856] ss:$8 sm:$0xf] %vm853, %v869
        %871 = vst.msk [vmem:[%s856] ss:$8 sm:$0x0] %vm853, %v869
        %s872 = scalar_lea.vmem %s381, 2 [#allocation10]
        %v873 = vld [vmem:[%s872] ss:$8 sm:$0xf]
        %v878 = vrot.slane %v642, 7
        %v879 = vrot.slane %v643, 6
        %v880 = vrot.slane %v644, 5
        %v881 = vsel %vm842, %v641, %v878
        %v882 = vsel %vm844, %v879, %v880
        %v883 = vsel %vm846, %v881, %v882
        %v885 = vadd.f32 %v873, %v883
        %886 = vst.msk [vmem:[%s872] ss:$8 sm:$0xf] %vm853, %v885
        %887 = vst.msk [vmem:[%s872] ss:$8 sm:$0x0] %vm853, %v885
        %s888 = scalar_lea.vmem %s381, 3 [#allocation10]
        %v889 = vld [vmem:[%s888] ss:$8 sm:$0xf]
        %v894 = vrot.slane %v827, 7
        %v895 = vrot.slane %v828, 6
        %v896 = vrot.slane %v829, 5
        %v897 = vsel %vm842, %v826, %v894
        %v898 = vsel %vm844, %v895, %v896
        %v899 = vsel %vm846, %v897, %v898
        %v901 = vadd.f32 %v889, %v899
        %902 = vst.msk [vmem:[%s888] ss:$8 sm:$0xf] %vm853, %v901
        %903 = vst.msk [vmem:[%s888] ss:$8 sm:$0x0] %vm853, %v901
        %s904 = scalar_lea.vmem %s381, 4 [#allocation10]
        %v905 = vld [vmem:[%s904] ss:$8 sm:$0xf]
        %v910 = vrot.slane %v831, 7
        %v911 = vrot.slane %v832, 6
        %v912 = vrot.slane %v833, 5
        %v913 = vsel %vm842, %v830, %v910
        %v914 = vsel %vm844, %v911, %v912
        %v915 = vsel %vm846, %v913, %v914
        %v917 = vadd.f32 %v905, %v915
        %918 = vst.msk [vmem:[%s904] ss:$8 sm:$0xf] %vm853, %v917
        %919 = vst.msk [vmem:[%s904] ss:$8 sm:$0x0] %vm853, %v917
        %s920 = sand.u32 %s176, 1
        %s921 = scalar_lea.sflag [#allocation4], %s920
        %s922 = sand.u32 %s176, 1
        %s923 = smul.addr %s922, 32
        %s924 = scalar_lea.vmem [#allocation10], %s923
        // Predicated region
        $region57: #{tpu_custom_call.1} parent=35 // pred_check
          %p925 = pneg %p186
        $region58: #{tpu_custom_call.1} parent=35 // pred_check_branch
          %927 = sbr.rel (%p925) target = $region60
        $region59: #{tpu_custom_call.1} parent=35 // pred_region
          %929 = vsyncadd %s921, 0
          %s930 = smul.addr %s33, 4
          %s931 = smul.addr %s32, 4
          %s932 = sadd.s32 %s930, %s931
          %s933 = smul.addr %s932, 8
          %s934 = scalar_lea.hbm %s4, %s933
          %s936 = sshll.u32 %s924, 4
          %s937 = int_to_ptr.vmem [resolvable:$true] %s936
          %s938 = sshll.u32 %s934, 4
          %s939 = int_to_ptr.hbm [resolvable:$true] %s938
          %941 = dma.vmem_to_hbm [thread:$0]  %s937, 512, %s939, %s921
        $region60: #{tpu_custom_call.1} parent=35 // pred_fallthru
          _
      $region36: #{tpu_custom_call.1} parent=5 // pred_fallthru
        _
      %p942 = scmp.le.s32.totalorder 2, %s22
      // Predicated region
      $region61: #{tpu_custom_call.1} parent=5 // pred_check
        %p943 = pneg %p942
      $region62: #{tpu_custom_call.1} parent=5 // pred_check_branch
        %945 = sbr.rel (%p943) target = $region64
      $region63: #{tpu_custom_call.1} parent=5 // pred_region
        %s946 = ssub.s32 %s22, 2
        // Predicated region
        $region65: #{tpu_custom_call.1} parent=63 // pred_check
          %p947 = pneg %p192
        $region66: #{tpu_custom_call.1} parent=63 // pred_check_branch
          %949 = sbr.rel (%p947) target = $region68
        $region67: #{tpu_custom_call.1} parent=63 // pred_region
          %s950 = sand.u32 %s177, 1
          %s951 = scalar_lea.sflag [#allocation4], %s950
          %s952 = sand.u32 %s177, 1
          %s953 = smul.addr %s952, 32
          %s954 = scalar_lea.vmem [#allocation10], %s953
          %956 = dma.done %s951, 512
        $region68: #{tpu_custom_call.1} parent=63 // pred_fallthru
          _
      $region64: #{tpu_custom_call.1} parent=5 // pred_fallthru
        _
    $region6: #{tpu_custom_call.1} parent=1 // loop_footer
      %s26 = sadd.s32 1, %s22
    $region7: #{tpu_custom_call.1} parent=1 // loop_footer_branch
      %21 = sbr.rel target = $region3
    $region8: #{tpu_custom_call.1} parent=1 // loop_exit
      _
    %957 = vsyncpa [#allocation3], 1
    %s958 = scalar_lea.sflag [#allocation3], 1
    %959 = vsyncpa %s958, 1
    %960 = vsyncpa [#allocation6], 1
    %s961 = scalar_lea.sflag [#allocation6], 1
    %962 = vsyncpa %s961, 1
    %963 = vsyncpa [#allocation9], 1
    %s964 = scalar_lea.sflag [#allocation9], 1
    %965 = vsyncpa %s964, 1
    %966 = vsyncpa [#allocation4], 1
    %s967 = scalar_lea.sflag [#allocation4], 1
    %968 = vsyncpa %s967, 1

</llo_original>
